<compile_context>
chip_gen: v7x
topology: tpu7x:2x2x1
jax: 0.10.0
libtpu: 0.0.40
codegen_flags: <defaults>
</compile_context>

<pallas_src>
import functools

import jax
import jax.numpy as jnp
from jax.experimental import pallas as pl
from jax.experimental.pallas import tpu as pltpu

EPS = 1e-5
_CHUNK_ROWS = 256            # in-kernel sub-chunk rows (bounds live f32 temps)
_TARGET_TILE_BYTES = 2 << 20  # ~2 MiB input tile -> near HBM roofline


def sandwich_norm_kernel(x_ref, wt_ref, params_ref, o_ref, *, ch):
    """One (tm, D) row tile: prenorm -> linear -> postnorm -> dropout(p=0)."""
    tm = x_ref.shape[0]
    num_chunks = tm // ch

    # Loop-invariant params, loaded once per grid step: (3, D) f32.
    p = params_ref[...]
    fused_b = p[0:1, :]       # beta1 @ W^T + b  (prenorm shift folded in)
    gamma2 = p[1:2, :]
    beta2 = p[2:3, :]

    def process_chunk(r0):
        x = x_ref[pl.ds(r0, ch), :].astype(jnp.float32)

        # prenorm: affine part folded into W^T / fused_b in the wrapper, so
        # only center * rsqrt(var + eps) remains here (f32 math, EUP rsqrt).
        mean = jnp.mean(x, axis=-1, keepdims=True)
        centered = x - mean
        var = jnp.mean(centered * centered, axis=-1, keepdims=True)
        h = centered * jax.lax.rsqrt(var + EPS)

        # fn = Linear(dim, dim): h @ (gamma1 * W^T) + (beta1 @ W^T + b).
        # W^T was pre-transposed / pre-scaled once in the wrapper; MXU matmul
        # in the shipped weight dtype (f32 or bf16) with an f32 accumulator.
        y = jnp.dot(h.astype(wt_ref.dtype), wt_ref[...],
                    preferred_element_type=jnp.float32)
        y = y + fused_b

        # postnorm: full LayerNorm (f32 math).
        m2 = jnp.mean(y, axis=-1, keepdims=True)
        c2 = y - m2
        v2 = jnp.mean(c2 * c2, axis=-1, keepdims=True)
        out = c2 * jax.lax.rsqrt(v2 + EPS) * gamma2 + beta2

        # dropout(p=0.0) == identity.
        o_ref[pl.ds(r0, ch), :] = out.astype(o_ref.dtype)

    if num_chunks == 1:
        process_chunk(0)
    else:
        def body(c, carry):
            process_chunk(pl.multiple_of(c * ch, ch))
            return carry
        jax.lax.fori_loop(0, num_chunks, body, 0, unroll=num_chunks <= 8)


def _round_up(v, m):
    return ((v + m - 1) // m) * m


def _round_down(v, m):
    return max(m, (v // m) * m)


def sandwich_norm(x, gamma1, beta1, w, b, gamma2, beta2, *, compute_dtype=None):
    B, S, D = x.shape
    assert D % 128 == 0, "feature dim must be 128-aligned for lane-dense I/O"
    R = B * S
    out_dtype = x.dtype
    if compute_dtype is None:
        compute_dtype = w.dtype          # matmul runs in the weight's dtype

    # ---- one-time parameter prep (hoisted out of the kernel) ---------------
    g1 = gamma1.reshape(D).astype(jnp.float32)
    b1 = beta1.reshape(D).astype(jnp.float32)
    w32 = w.astype(jnp.float32)
    # Fold prenorm affine into the linear layer (exact algebra):
    #   LN1(x) @ W^T + b
    #     = ((x - mu) * rsqrt(var + eps)) @ (gamma1[:, None] * W^T)
    #       + (beta1 @ W^T + b)
    wt = (w32.T * g1[:, None]).astype(compute_dtype)           # (D_in, D_out)
    fused_b = (b1 @ w32.T + b.astype(jnp.float32)).reshape(1, D)
    params = jnp.concatenate(
        [fused_b,
         gamma2.reshape(1, D).astype(jnp.float32),
         beta2.reshape(1, D).astype(jnp.float32)], axis=0)     # (3, D) f32

    x2 = x.reshape(R, D)       # free reshape; no pad / slice HBM passes

    # ---- tile sizing --------------------------------------------------------
    x_item = jnp.dtype(x.dtype).itemsize
    o_item = jnp.dtype(out_dtype).itemsize
    w_item = jnp.dtype(compute_dtype).itemsize
    sub = 32 // min(x_item, o_item)     # sublane granule: 8 f32 / 16 bf16 / 32 i8

    # Generation-aware VMEM budget: 0.75 * physical VMEM (~96 MiB v5e/v6e,
    # ~48 MiB v7x); conservative 48 MiB fallback if the query is unavailable.
    try:
        vmem_cap = int(pltpu.get_tpu_info().vmem_capacity_bytes)
    except Exception:
        vmem_cap = 64 << 20
    vmem_budget = max(32 << 20, int(0.75 * vmem_cap))

    # Fixed VMEM: resident weight (counted double-buffered even though single
    # buffering is requested), stacked params, live f32 intermediates of one
    # sub-chunk (~6 (ch, D) arrays), plus headroom.
    weight_bytes = 2 * D * D * w_item
    params_bytes = 2 * 8 * D * 4
    interm_bytes = 6 * _CHUNK_ROWS * D * 4
    headroom = 2 << 20
    fixed_bytes = weight_bytes + params_bytes + interm_bytes + headroom
    per_row = 2 * D * (x_item + o_item)   # double-buffered x + out row tiles

    tm_target = max(sub, _TARGET_TILE_BYTES // (D * x_item))
    tm_vmem = max(sub, (vmem_budget - fixed_bytes) // per_row)
    tm_two_steps = _round_up(-(-R // 2), sub)   # keep >=2 grid steps (v7x megacore)
    tm = min(tm_target, tm_vmem, tm_two_steps)
    tm = _round_down(tm, sub)
    if tm >= _CHUNK_ROWS:
        tm = _round_down(tm, _CHUNK_ROWS)       # sub-chunks divide the tile evenly
    if tm >= R:
        tm = R                                  # single full-extent block (legal)
    ch = min(tm, _CHUNK_ROWS)
    assert tm % ch == 0

    vmem_needed = (tm * per_row + weight_bytes + params_bytes
                   + 6 * ch * D * 4 + headroom)
    vmem_limit = int(min(max(vmem_needed, 16 << 20), vmem_budget))

    kernel = functools.partial(sandwich_norm_kernel, ch=ch)
    grid = (pl.cdiv(R, tm),)   # partial final block handled by Pallas masking

    def _run(single_buffer_invariants):
        inv_kw = ({"pipeline_mode": pl.Buffered(1)}
                  if single_buffer_invariants else {})
        grid_spec = pltpu.PrefetchScalarGridSpec(
            num_scalar_prefetch=0,
            grid=grid,
            in_specs=[
                pl.BlockSpec((tm, D), lambda i: (i, 0)),            # x rows
                pl.BlockSpec((D, D), lambda i: (0, 0), **inv_kw),   # gamma1*W^T
                pl.BlockSpec((3, D), lambda i: (0, 0), **inv_kw),   # b/g2/b2
            ],
            out_specs=pl.BlockSpec((tm, D), lambda i: (i, 0)),
        )
        return pl.pallas_call(
            kernel,
            out_shape=jax.ShapeDtypeStruct((R, D), out_dtype),
            grid_spec=grid_spec,
            compiler_params=pltpu.CompilerParams(
                dimension_semantics=("parallel",),   # megacore-shardable (v7x)
                vmem_limit_bytes=vmem_limit,
            ),
        )(x2, wt, params)

    try:
        out2 = _run(True)
    except Exception:
        # TODO(synk): pipeline_mode=pl.Buffered(1) (single-buffered invariant
        # operands) is not accepted by every Pallas version in the plain
        # pallas_call pipeline; the weight is still only fetched once (its
        # block index is constant), so fall back to default double buffering.
        out2 = _run(False)

    return out2.reshape(B, S, D)


if __name__ == "__main__":
    key = jax.random.PRNGKey(0)
    # S=9 is chosen so R = B*S is NOT a multiple of the row tile, exercising
    # the masked partial final block (replaces the old pad/slice path).
    B, S, D = 2, 9, 128
    keys = jax.random.split(key, 7)

    x = jax.random.normal(keys[0], (B, S, D), dtype=jnp.float32)
    gamma1 = 1.0 + 0.1 * jax.random.normal(keys[1], (D,), dtype=jnp.float32)
    beta1 = 0.05 * jax.random.normal(keys[2], (D,), dtype=jnp.float32)
    gamma2 = 1.0 + 0.1 * jax.random.normal(keys[3], (D,), dtype=jnp.float32)
    beta2 = 0.05 * jax.random.normal(keys[4], (D,), dtype=jnp.float32)
    w = jax.random.normal(keys[5], (D, D), dtype=jnp.float32) / (D ** 0.5)
    b = 0.01 * jax.random.normal(keys[6], (D,), dtype=jnp.float32)

    out = sandwich_norm(x, gamma1, beta1, w, b, gamma2, beta2)
    jax.block_until_ready(out)

    # Pure-JAX reference (unfolded math).
    def ln(v, g, bt):
        m = jnp.mean(v, -1, keepdims=True)
        c = v - m
        var = jnp.mean(c * c, -1, keepdims=True)
        return c * jax.lax.rsqrt(var + EPS) * g + bt

    ref = ln(ln(x, gamma1, beta1) @ w.T + b, gamma2, beta2)
    assert out.shape == ref.shape
    err_f32 = float(jnp.max(jnp.abs(out - ref)))
    assert err_f32 < 3e-4, f"f32 path max abs err {err_f32}"

    # bf16 MXU path (flagged precision change from the review) — looser check.
    out_bf16 = sandwich_norm(x, gamma1, beta1, w, b, gamma2, beta2,
                             compute_dtype=jnp.bfloat16)
    jax.block_until_ready(out_bf16)
    err_bf16 = float(jnp.max(jnp.abs(out_bf16 - ref)))
    assert err_bf16 < 1e-1, f"bf16 path max abs err {err_bf16}"

    print("KERNEL_OK")
</pallas_src>

<mosaic_0001>
module attributes {stable_mosaic.version = 11 : i64} {
  func.func @sandwich_norm_kernel(%arg0: i32, %arg1: memref<16x128xf32, #tpu.memory_space<vmem>>, %arg2: memref<128x128xf32, #tpu.memory_space<vmem>>, %arg3: memref<3x128xf32, #tpu.memory_space<vmem>>, %arg4: memref<16x128xf32, #tpu.memory_space<vmem>>) attributes {dimension_semantics = [#tpu.dimension_semantics<parallel>], iteration_bounds = array<i64: 2>, scalar_prefetch = 0 : i64, scratch_operands = 0 : i64, tpu.core_type = #tpu.core_type<tc>, window_params = [{transform_indices = @transform_0, window_bounds = array<i64: 16, 128>}, {pipeline_mode = #tpu.pipeline_mode<synchronous>, transform_indices = @transform_1, window_bounds = array<i64: 128, 128>}, {pipeline_mode = #tpu.pipeline_mode<synchronous>, transform_indices = @transform_2, window_bounds = array<i64: 3, 128>}, {transform_indices = @transform_3, window_bounds = array<i64: 16, 128>}]} {
    %c0 = arith.constant 0 : index
    %c0_0 = arith.constant 0 : index
    %0 = vector.load %arg3[%c0, %c0_0] : memref<3x128xf32, #tpu.memory_space<vmem>>, vector<3x128xf32>
    %1 = vector.extract_strided_slice %0 {offsets = [0, 0], sizes = [1, 128], strides = [1, 1]} : vector<3x128xf32> to vector<1x128xf32>
    %2 = vector.extract_strided_slice %0 {offsets = [1, 0], sizes = [1, 128], strides = [1, 1]} : vector<3x128xf32> to vector<1x128xf32>
    %3 = vector.extract_strided_slice %0 {offsets = [2, 0], sizes = [1, 128], strides = [1, 1]} : vector<3x128xf32> to vector<1x128xf32>
    %c0_1 = arith.constant 0 : index
    %c0_2 = arith.constant 0 : index
    %4 = vector.load %arg1[%c0_1, %c0_2] : memref<16x128xf32, #tpu.memory_space<vmem>>, vector<16x128xf32>
    %cst = arith.constant dense<0.000000e+00> : vector<16xf32>
    %5 = vector.multi_reduction <add>, %4, %cst [1] : vector<16x128xf32> to vector<16xf32>
    %6 = vector.shape_cast %5 : vector<16xf32> to vector<16x1xf32>
    %cst_3 = arith.constant 1.280000e+02 : f32
    %7 = vector.broadcast %cst_3 : f32 to vector<16x1xf32>
    %8 = arith.divf %6, %7 : vector<16x1xf32>
    %9 = vector.broadcast %8 : vector<16x1xf32> to vector<16x128xf32>
    %10 = arith.subf %4, %9 : vector<16x128xf32>
    %11 = arith.mulf %10, %10 : vector<16x128xf32>
    %cst_4 = arith.constant dense<0.000000e+00> : vector<16xf32>
    %12 = vector.multi_reduction <add>, %11, %cst_4 [1] : vector<16x128xf32> to vector<16xf32>
    %13 = vector.shape_cast %12 : vector<16xf32> to vector<16x1xf32>
    %cst_5 = arith.constant 1.280000e+02 : f32
    %14 = vector.broadcast %cst_5 : f32 to vector<16x1xf32>
    %15 = arith.divf %13, %14 : vector<16x1xf32>
    %cst_6 = arith.constant 9.99999974E-6 : f32
    %16 = vector.broadcast %cst_6 : f32 to vector<16x1xf32>
    %17 = arith.addf %15, %16 : vector<16x1xf32>
    %18 = math.rsqrt %17 : vector<16x1xf32>
    %19 = vector.broadcast %18 : vector<16x1xf32> to vector<16x128xf32>
    %20 = arith.mulf %10, %19 : vector<16x128xf32>
    %c0_7 = arith.constant 0 : index
    %c0_8 = arith.constant 0 : index
    %21 = vector.load %arg2[%c0_7, %c0_8] : memref<128x128xf32, #tpu.memory_space<vmem>>, vector<128x128xf32>
    %cst_9 = arith.constant dense<0.000000e+00> : vector<16x128xf32>
    %22 = tpu.matmul %20, %21, %cst_9 {dimension_numbers = #tpu.dot_dimension_numbers<[1], [0], [0], [1], [0, 0, 1, 1], [], []>} : vector<16x128xf32>, vector<128x128xf32>, vector<16x128xf32> -> vector<16x128xf32>
    %23 = vector.broadcast %1 : vector<1x128xf32> to vector<16x128xf32>
    %24 = arith.addf %22, %23 : vector<16x128xf32>
    %cst_10 = arith.constant dense<0.000000e+00> : vector<16xf32>
    %25 = vector.multi_reduction <add>, %24, %cst_10 [1] : vector<16x128xf32> to vector<16xf32>
    %26 = vector.shape_cast %25 : vector<16xf32> to vector<16x1xf32>
    %cst_11 = arith.constant 1.280000e+02 : f32
    %27 = vector.broadcast %cst_11 : f32 to vector<16x1xf32>
    %28 = arith.divf %26, %27 : vector<16x1xf32>
    %29 = vector.broadcast %28 : vector<16x1xf32> to vector<16x128xf32>
    %30 = arith.subf %24, %29 : vector<16x128xf32>
    %31 = arith.mulf %30, %30 : vector<16x128xf32>
    %cst_12 = arith.constant dense<0.000000e+00> : vector<16xf32>
    %32 = vector.multi_reduction <add>, %31, %cst_12 [1] : vector<16x128xf32> to vector<16xf32>
    %33 = vector.shape_cast %32 : vector<16xf32> to vector<16x1xf32>
    %cst_13 = arith.constant 1.280000e+02 : f32
    %34 = vector.broadcast %cst_13 : f32 to vector<16x1xf32>
    %35 = arith.divf %33, %34 : vector<16x1xf32>
    %cst_14 = arith.constant 9.99999974E-6 : f32
    %36 = vector.broadcast %cst_14 : f32 to vector<16x1xf32>
    %37 = arith.addf %35, %36 : vector<16x1xf32>
    %38 = math.rsqrt %37 : vector<16x1xf32>
    %39 = vector.broadcast %38 : vector<16x1xf32> to vector<16x128xf32>
    %40 = arith.mulf %30, %39 : vector<16x128xf32>
    %41 = vector.broadcast %2 : vector<1x128xf32> to vector<16x128xf32>
    %42 = arith.mulf %40, %41 : vector<16x128xf32>
    %43 = vector.broadcast %3 : vector<1x128xf32> to vector<16x128xf32>
    %44 = arith.addf %42, %43 : vector<16x128xf32>
    %c0_15 = arith.constant 0 : index
    %c0_16 = arith.constant 0 : index
    %45 = vector.load %arg4[%c0_15, %c0_16] : memref<16x128xf32, #tpu.memory_space<vmem>>, vector<16x128xf32>
    tpu.vector_store %arg4[%c0_15, %c0_16], %44 {strides = array<i32>} : memref<16x128xf32, #tpu.memory_space<vmem>>, vector<16x128xf32>,
    return
  }
  func.func @transform_0(%arg0: i32) -> (i32, i32) {
    %c0_i32 = arith.constant 0 : i32
    %c0_i32_0 = arith.constant 0 : i32
    return %arg0, %c0_i32 : i32, i32
  }
  func.func @transform_1(%arg0: i32) -> (i32, i32) {
    %c0_i32 = arith.constant 0 : i32
    %c0_i32_0 = arith.constant 0 : i32
    %c0_i32_1 = arith.constant 0 : i32
    return %c0_i32, %c0_i32_0 : i32, i32
  }
  func.func @transform_2(%arg0: i32) -> (i32, i32) {
    %c0_i32 = arith.constant 0 : i32
    %c0_i32_0 = arith.constant 0 : i32
    %c0_i32_1 = arith.constant 0 : i32
    return %c0_i32, %c0_i32_0 : i32, i32
  }
  func.func @transform_3(%arg0: i32) -> (i32, i32) {
    %c0_i32 = arith.constant 0 : i32
    %c0_i32_0 = arith.constant 0 : i32
    return %arg0, %c0_i32 : i32, i32
  }
}

module attributes {stable_mosaic.version = 11 : i64} {
  func.func @sandwich_norm_kernel(%arg0: i32, %arg1: memref<16x128xf32, #tpu.memory_space<vmem>>, %arg2: memref<128x128xf32, #tpu.memory_space<vmem>>, %arg3: memref<3x128xf32, #tpu.memory_space<vmem>>, %arg4: memref<16x128xf32, #tpu.memory_space<vmem>>) attributes {dimension_semantics = [#tpu.dimension_semantics<parallel>], iteration_bounds = array<i64: 2>, scalar_prefetch = 0 : i64, scratch_operands = 0 : i64, tpu.core_type = #tpu.core_type<tc>, window_params = [{transform_indices = @transform_0, window_bounds = array<i64: 16, 128>}, {pipeline_mode = #tpu.pipeline_mode<synchronous>, transform_indices = @transform_1, window_bounds = array<i64: 128, 128>}, {pipeline_mode = #tpu.pipeline_mode<synchronous>, transform_indices = @transform_2, window_bounds = array<i64: 3, 128>}, {transform_indices = @transform_3, window_bounds = array<i64: 16, 128>}]} {
    %c0 = arith.constant 0 : index
    %c0_0 = arith.constant 0 : index
    %0 = vector.load %arg3[%c0, %c0_0] : memref<3x128xf32, #tpu.memory_space<vmem>>, vector<3x128xf32>
    %1 = vector.extract_strided_slice %0 {offsets = [0, 0], sizes = [1, 128], strides = [1, 1]} : vector<3x128xf32> to vector<1x128xf32>
    %2 = vector.extract_strided_slice %0 {offsets = [1, 0], sizes = [1, 128], strides = [1, 1]} : vector<3x128xf32> to vector<1x128xf32>
    %3 = vector.extract_strided_slice %0 {offsets = [2, 0], sizes = [1, 128], strides = [1, 1]} : vector<3x128xf32> to vector<1x128xf32>
    %c0_1 = arith.constant 0 : index
    %c0_2 = arith.constant 0 : index
    %4 = vector.load %arg1[%c0_1, %c0_2] : memref<16x128xf32, #tpu.memory_space<vmem>>, vector<16x128xf32>
    %cst = arith.constant dense<0.000000e+00> : vector<16xf32>
    %5 = vector.multi_reduction <add>, %4, %cst [1] : vector<16x128xf32> to vector<16xf32>
    %6 = vector.shape_cast %5 : vector<16xf32> to vector<16x1xf32>
    %cst_3 = arith.constant 1.280000e+02 : f32
    %7 = vector.broadcast %cst_3 : f32 to vector<16x1xf32>
    %8 = arith.divf %6, %7 : vector<16x1xf32>
    %9 = vector.broadcast %8 : vector<16x1xf32> to vector<16x128xf32>
    %10 = arith.subf %4, %9 : vector<16x128xf32>
    %11 = arith.mulf %10, %10 : vector<16x128xf32>
    %cst_4 = arith.constant dense<0.000000e+00> : vector<16xf32>
    %12 = vector.multi_reduction <add>, %11, %cst_4 [1] : vector<16x128xf32> to vector<16xf32>
    %13 = vector.shape_cast %12 : vector<16xf32> to vector<16x1xf32>
    %cst_5 = arith.constant 1.280000e+02 : f32
    %14 = vector.broadcast %cst_5 : f32 to vector<16x1xf32>
    %15 = arith.divf %13, %14 : vector<16x1xf32>
    %cst_6 = arith.constant 9.99999974E-6 : f32
    %16 = vector.broadcast %cst_6 : f32 to vector<16x1xf32>
    %17 = arith.addf %15, %16 : vector<16x1xf32>
    %18 = math.rsqrt %17 : vector<16x1xf32>
    %19 = vector.broadcast %18 : vector<16x1xf32> to vector<16x128xf32>
    %20 = arith.mulf %10, %19 : vector<16x128xf32>
    %c0_7 = arith.constant 0 : index
    %c0_8 = arith.constant 0 : index
    %21 = vector.load %arg2[%c0_7, %c0_8] : memref<128x128xf32, #tpu.memory_space<vmem>>, vector<128x128xf32>
    %cst_9 = arith.constant dense<0.000000e+00> : vector<16x128xf32>
    %22 = tpu.matmul %20, %21, %cst_9 {dimension_numbers = #tpu.dot_dimension_numbers<[1], [0], [0], [1], [0, 0, 1, 1], [], []>} : vector<16x128xf32>, vector<128x128xf32>, vector<16x128xf32> -> vector<16x128xf32>
    %23 = vector.broadcast %1 : vector<1x128xf32> to vector<16x128xf32>
    %24 = arith.addf %22, %23 : vector<16x128xf32>
    %cst_10 = arith.constant dense<0.000000e+00> : vector<16xf32>
    %25 = vector.multi_reduction <add>, %24, %cst_10 [1] : vector<16x128xf32> to vector<16xf32>
    %26 = vector.shape_cast %25 : vector<16xf32> to vector<16x1xf32>
    %cst_11 = arith.constant 1.280000e+02 : f32
    %27 = vector.broadcast %cst_11 : f32 to vector<16x1xf32>
    %28 = arith.divf %26, %27 : vector<16x1xf32>
    %29 = vector.broadcast %28 : vector<16x1xf32> to vector<16x128xf32>
    %30 = arith.subf %24, %29 : vector<16x128xf32>
    %31 = arith.mulf %30, %30 : vector<16x128xf32>
    %cst_12 = arith.constant dense<0.000000e+00> : vector<16xf32>
    %32 = vector.multi_reduction <add>, %31, %cst_12 [1] : vector<16x128xf32> to vector<16xf32>
    %33 = vector.shape_cast %32 : vector<16xf32> to vector<16x1xf32>
    %cst_13 = arith.constant 1.280000e+02 : f32
    %34 = vector.broadcast %cst_13 : f32 to vector<16x1xf32>
    %35 = arith.divf %33, %34 : vector<16x1xf32>
    %cst_14 = arith.constant 9.99999974E-6 : f32
    %36 = vector.broadcast %cst_14 : f32 to vector<16x1xf32>
    %37 = arith.addf %35, %36 : vector<16x1xf32>
    %38 = math.rsqrt %37 : vector<16x1xf32>
    %39 = vector.broadcast %38 : vector<16x1xf32> to vector<16x128xf32>
    %40 = arith.mulf %30, %39 : vector<16x128xf32>
    %41 = vector.broadcast %2 : vector<1x128xf32> to vector<16x128xf32>
    %42 = arith.mulf %40, %41 : vector<16x128xf32>
    %43 = vector.broadcast %3 : vector<1x128xf32> to vector<16x128xf32>
    %44 = arith.addf %42, %43 : vector<16x128xf32>
    %c0_15 = arith.constant 0 : index
    %c0_16 = arith.constant 0 : index
    %45 = vector.load %arg4[%c0_15, %c0_16] : memref<16x128xf32, #tpu.memory_space<vmem>>, vector<16x128xf32>
    tpu.vector_store %arg4[%c0_15, %c0_16], %44 {strides = array<i32>} : memref<16x128xf32, #tpu.memory_space<vmem>>, vector<16x128xf32>,
    return
  }
  func.func @transform_0(%arg0: i32) -> (i32, i32) {
    %c0_i32 = arith.constant 0 : i32
    %c0_i32_0 = arith.constant 0 : i32
    return %arg0, %c0_i32 : i32, i32
  }
  func.func @transform_1(%arg0: i32) -> (i32, i32) {
    %c0_i32 = arith.constant 0 : i32
    %c0_i32_0 = arith.constant 0 : i32
    %c0_i32_1 = arith.constant 0 : i32
    return %c0_i32, %c0_i32_0 : i32, i32
  }
  func.func @transform_2(%arg0: i32) -> (i32, i32) {
    %c0_i32 = arith.constant 0 : i32
    %c0_i32_0 = arith.constant 0 : i32
    %c0_i32_1 = arith.constant 0 : i32
    return %c0_i32, %c0_i32_0 : i32, i32
  }
  func.func @transform_3(%arg0: i32) -> (i32, i32) {
    %c0_i32 = arith.constant 0 : i32
    %c0_i32_0 = arith.constant 0 : i32
    return %arg0, %c0_i32 : i32, i32
  }
}

</mosaic_0001>

<llo_original>
// kernel: tpu_custom_call.1
$region0: #{tpu_custom_call.1}
  #allocation0 [shape = 'u32[]', space=smem, size = 0x4, offset = 0x4, fixed_abs, tag = 'smem constant byte address 0x4 - core index']
  #allocation1 [shape = 'u32[144,128]{1,0:T(1,128)}', space=vmem, size = 0x12000, scoped, tag = 'internal scratch']
  %s0 = inlined_call_operand.hbm [shape: f32[18,128], index: 0, kind: input, shape index: {}]
  %s1 = inlined_call_operand.hbm [shape: f32[128,128], index: 1, kind: input, shape index: {}]
  %s2 = inlined_call_operand.vmem [shape: f32[3,128], index: 2, kind: input, shape index: {}]
  %s3 = inlined_call_operand.hbm [shape: f32[18,128], index: 3, kind: output, shape index: {}]
  %s4 = sld [smem:[#allocation0]]
  $region53: #{tpu_custom_call.1} parent=0
    _
  %s6 = ssub.s32 1, %s4
  %s7 = scalar_select 0, %s6, %s4
  $region1: #{tpu_custom_call.1} parent=0
    #allocation2 [shape = 'u8[16384]{0}', space=vmem, size = 0x4000, scoped, tag = 'input window, operand 0']
    #allocation3 [shape = 's32[2]{0}', space=sflag, size = 0x8, scoped, tag = 'scoped memory for tpu_custom_call.1']
    #allocation4 [shape = 's32[2]{0}', space=sflag, size = 0x8, scoped, tag = 'scoped memory for tpu_custom_call.1']
    #allocation5 [shape = 'u8[65536]{0}', space=vmem, size = 0x10000, scoped, tag = 'input window, operand 1, single buffered']
    #allocation6 [shape = 's32[1]{0}', space=sflag, size = 0x4, scoped, tag = 'scoped memory for tpu_custom_call.1']
    #allocation7 [shape = 'u8[16384]{0}', space=vmem, size = 0x4000, scoped, tag = 'output window, operand 0']
    %8 = vsyncpa [#allocation3], 0
    %s9 = scalar_lea.sflag [#allocation3], 1
    %10 = vsyncpa %s9, 0
    %11 = vsyncpa [#allocation6], 0
    %12 = vsyncpa [#allocation4], 0
    %s13 = scalar_lea.sflag [#allocation4], 1
    %14 = vsyncpa %s13, 0
    loop: start=0, step=1, limit=4
    $region2: #{tpu_custom_call.1} parent=1 // loop_pre_header
      _
    $region3: #{tpu_custom_call.1} parent=1 // loop_header
      %s16 = sphi 0, %s20
      %p17 = scmp.ge.s32.totalorder %s16, 4
      %s26 = sphi 0, %s28
      %s29 = sphi 0, %s26
      %s30 = sphi 0, %s29
      %s46 = sphi 0, %s30
      %s50 = sphi 0, %s50
      %s52 = sphi 0, %s50
      %s53 = sphi 0, %s52
      %s67 = sphi 0, %s53
      %s71 = sphi 0, %s71
      %s73 = sphi 0, %s71
      %s74 = sphi 0, %s73
      %s88 = sphi 0, %s74
      %s94 = sphi 0, %s96
      %s97 = sphi 0, %s94
      %s98 = sphi 0, %s97
      %s114 = sphi 0, %s98
    $region4: #{tpu_custom_call.1} parent=1 // loop_header_branch
      %19 = sbr.rel (%p17) target = $region8
    $region5: #{tpu_custom_call.1} parent=1 // loop_body
      %s21 = ssub.s32 %s16, 1
      %s22 = ssub.s32 %s16, 2
      %s23 = sadd.s32 %s16, 1
      %s24 = ssub.s32 %s16, %s23
      %p25 = scmp.eq.s32.totalorder %s24, 0
      %s27 = sadd.s32 %s26, 1
      %s28 = scalar_select %p25, %s26, %s27
      %p31 = pneg %p25
      %p32 = scmp.eq.s32.totalorder %s16, 1
      %p33 = por %p31, %p32
      %p34 = scmp.ne.s32.totalorder %s26, %s29
      %p35 = scmp.eq.s32.totalorder %s16, 0
      %p36 = por %p34, %p35
      %p37 = scmp.ne.s32.totalorder %s26, %s29
      %p38 = scmp.eq.s32.totalorder %s21, 1
      %p39 = por %p37, %p38
      %p40 = scmp.ne.s32.totalorder %s29, %s30
      %p41 = scmp.eq.s32.totalorder %s21, 0
      %p42 = por %p40, %p41
      %p43 = scmp.ne.s32.totalorder %s29, %s30
      %p44 = scmp.eq.s32.totalorder %s22, 1
      %p45 = por %p43, %p44
      %p47 = scmp.ne.s32.totalorder %s30, %s46
      %p48 = scmp.eq.s32.totalorder %s22, 0
      %p49 = por %p47, %p48
      %s51 = sadd.s32 %s50, 1
      %p54 = scmp.eq.s32.totalorder %s16, 1
      %p55 = scmp.ne.s32.totalorder %s50, %s52
      %p56 = scmp.eq.s32.totalorder %s16, 0
      %p57 = por %p55, %p56
      %p58 = scmp.ne.s32.totalorder %s50, %s52
      %p59 = scmp.eq.s32.totalorder %s21, 1
      %p60 = por %p58, %p59
      %p61 = scmp.ne.s32.totalorder %s52, %s53
      %p62 = scmp.eq.s32.totalorder %s21, 0
      %p63 = por %p61, %p62
      %p64 = scmp.ne.s32.totalorder %s52, %s53
      %p65 = scmp.eq.s32.totalorder %s22, 1
      %p66 = por %p64, %p65
      %p68 = scmp.ne.s32.totalorder %s53, %s67
      %p69 = scmp.eq.s32.totalorder %s22, 0
      %p70 = por %p68, %p69
      %s72 = sadd.s32 %s71, 1
      %p75 = scmp.eq.s32.totalorder %s16, 1
      %p76 = scmp.ne.s32.totalorder %s71, %s73
      %p77 = scmp.eq.s32.totalorder %s16, 0
      %p78 = por %p76, %p77
      %p79 = scmp.ne.s32.totalorder %s71, %s73
      %p80 = scmp.eq.s32.totalorder %s21, 1
      %p81 = por %p79, %p80
      %p82 = scmp.ne.s32.totalorder %s73, %s74
      %p83 = scmp.eq.s32.totalorder %s21, 0
      %p84 = por %p82, %p83
      %p85 = scmp.ne.s32.totalorder %s73, %s74
      %p86 = scmp.eq.s32.totalorder %s22, 1
      %p87 = por %p85, %p86
      %p89 = scmp.ne.s32.totalorder %s74, %s88
      %p90 = scmp.eq.s32.totalorder %s22, 0
      %p91 = por %p89, %p90
      %s92 = ssub.s32 %s16, %s23
      %p93 = scmp.eq.s32.totalorder %s92, 0
      %s95 = sadd.s32 %s94, 1
      %s96 = scalar_select %p93, %s94, %s95
      %p99 = pneg %p93
      %p100 = scmp.eq.s32.totalorder %s16, 1
      %p101 = por %p99, %p100
      %p102 = scmp.ne.s32.totalorder %s94, %s97
      %p103 = scmp.eq.s32.totalorder %s16, 0
      %p104 = por %p102, %p103
      %p105 = scmp.ne.s32.totalorder %s94, %s97
      %p106 = scmp.eq.s32.totalorder %s21, 1
      %p107 = por %p105, %p106
      %p108 = scmp.ne.s32.totalorder %s97, %s98
      %p109 = scmp.eq.s32.totalorder %s21, 0
      %p110 = por %p108, %p109
      %p111 = scmp.ne.s32.totalorder %s97, %s98
      %p112 = scmp.eq.s32.totalorder %s22, 1
      %p113 = por %p111, %p112
      %p115 = scmp.ne.s32.totalorder %s98, %s114
      %p116 = scmp.eq.s32.totalorder %s22, 0
      %p117 = por %p115, %p116
      %p118 = scmp.le.s32.totalorder 1, %s16
      %p119 = scmp.lt.s32.totalorder %s16, 3
      %p120 = pnand %p118, %p119
      %p121 = pneg %p120
      // Predicated region
      $region9: #{tpu_custom_call.1} parent=5 // pred_check
        _
      $region10: #{tpu_custom_call.1} parent=5 // pred_check_branch
        %123 = sbr.rel (%p120) target = $region12
      $region11: #{tpu_custom_call.1} parent=5 // pred_region
        %s124 = ssub.s32 %s16, 1
        // Predicated region
        $region13: #{tpu_custom_call.1} parent=11 // pred_check
          %p125 = pneg %p63
        $region14: #{tpu_custom_call.1} parent=11 // pred_check_branch
          %127 = sbr.rel (%p125) target = $region16
        $region15: #{tpu_custom_call.1} parent=11 // pred_region
          %s129 = ssub.s32 2048, 2048
          %130 = vsyncadd [#allocation6], %s129
          %s131 = sshll.u32 [#allocation5], 4
          %s132 = int_to_ptr.vmem [resolvable:$true] %s131
          %137 = dma.hbm_to_vmem [thread:$0]  %s1, 2048, %s132, [#allocation6], 128, 128, 8
        $region16: #{tpu_custom_call.1} parent=11 // pred_fallthru
          _
        // Predicated region
        $region17: #{tpu_custom_call.1} parent=11 // pred_check
          %p138 = pneg %p84
        $region18: #{tpu_custom_call.1} parent=11 // pred_check_branch
          %140 = sbr.rel (%p138) target = $region20
        $region19: #{tpu_custom_call.1} parent=11 // pred_region
          _
        $region20: #{tpu_custom_call.1} parent=11 // pred_fallthru
          _
      $region12: #{tpu_custom_call.1} parent=5 // pred_fallthru
        _
      %p141 = scmp.lt.s32.totalorder %s16, 2
      // Predicated region
      $region21: #{tpu_custom_call.1} parent=5 // pred_check
        %p142 = pneg %p141
      $region22: #{tpu_custom_call.1} parent=5 // pred_check_branch
        %144 = sbr.rel (%p142) target = $region24
      $region23: #{tpu_custom_call.1} parent=5 // pred_region
        // Predicated region
        $region25: #{tpu_custom_call.1} parent=23 // pred_check
          %p145 = pneg %p36
        $region26: #{tpu_custom_call.1} parent=23 // pred_check_branch
          %147 = sbr.rel (%p145) target = $region28
        $region27: #{tpu_custom_call.1} parent=23 // pred_region
          %s148 = sand.u32 %s26, 1
          %s149 = scalar_lea.sflag [#allocation3], %s148
          %s150 = sand.u32 %s26, 1
          %s151 = smul.addr %s150, 16
          %s152 = scalar_lea.vmem [#allocation2], %s151
          %s153 = smul.u32 2, %s16
          %s154 = ssub.s32 3, %s153
          %p155 = scmp.lt.s32.totalorder %s154, 2
          %s156 = scalar_select %p155, %s154, 2
          %s157 = smul.u32 128, %s156
          %s159 = ssub.s32 256, %s157
          %160 = vsyncadd %s149, %s159
          %p161 = scmp.ne.s32.totalorder 0, %s157
          %s162 = smul.addr %s153, 128
          %s163 = scalar_lea.hbm %s0, %s162
          %s164 = smul.u32 8, %s156
          %s165 = sshll.u32 %s152, 4
          %s166 = int_to_ptr.vmem [resolvable:$true] %s165
          %s167 = sshll.u32 %s164, 4
          %171 = dma.hbm_to_vmem [thread:$0]  (%p161), %s163, %s167, %s166, %s149, 128, 128, 8
        $region28: #{tpu_custom_call.1} parent=23 // pred_fallthru
          _
      $region24: #{tpu_custom_call.1} parent=5 // pred_fallthru
        _
      %p172 = scmp.le.s32.totalorder 1, %s16
      %p173 = scmp.lt.s32.totalorder %s16, 3
      %p174 = pnand %p172, %p173
      %p175 = pneg %p174
      // Predicated region
      $region29: #{tpu_custom_call.1} parent=5 // pred_check
        _
      $region30: #{tpu_custom_call.1} parent=5 // pred_check_branch
        %177 = sbr.rel (%p174) target = $region32
      $region31: #{tpu_custom_call.1} parent=5 // pred_region
        %s178 = ssub.s32 %s16, 1
        %s179 = sand.u32 %s29, 1
        %s180 = scalar_lea.sflag [#allocation3], %s179
        %s181 = sand.u32 %s29, 1
        %s182 = smul.addr %s181, 16
        %s183 = scalar_lea.vmem [#allocation2], %s182
        // Predicated region
        $region33: #{tpu_custom_call.1} parent=31 // pred_check
          %p184 = pneg %p42
        $region34: #{tpu_custom_call.1} parent=31 // pred_check_branch
          %186 = sbr.rel (%p184) target = $region36
        $region35: #{tpu_custom_call.1} parent=31 // pred_region
          %187 = dma.done %s180, 256
        $region36: #{tpu_custom_call.1} parent=31 // pred_fallthru
          _
        // Predicated region
        $region37: #{tpu_custom_call.1} parent=31 // pred_check
          %p188 = pneg %p63
        $region38: #{tpu_custom_call.1} parent=31 // pred_check_branch
          %190 = sbr.rel (%p188) target = $region40
        $region39: #{tpu_custom_call.1} parent=31 // pred_region
          %191 = dma.done [#allocation6], 2048
        $region40: #{tpu_custom_call.1} parent=31 // pred_fallthru
          _
        %s192 = sand.u32 %s29, 1
        %s193 = scalar_lea.sflag [#allocation3], %s192
        %s194 = sand.u32 %s29, 1
        %s195 = smul.addr %s194, 16
        %s196 = scalar_lea.vmem [#allocation2], %s195
        %p197 = pneg %p42
        %p198 = pneg %p39
        %p199 = pneg %p63
        %p200 = pneg %p60
        %p201 = pneg %p84
        %p202 = pneg %p81
        %p203 = pneg %p110
        %p204 = pneg %p107
        %s205 = sand.u32 %s97, 1
        %s206 = scalar_lea.sflag [#allocation4], %s205
        %s207 = sand.u32 %s97, 1
        %s208 = smul.addr %s207, 16
        %s209 = scalar_lea.vmem [#allocation7], %s208
        %s210 = smul.u32 2, %s21
        %s211 = ssub.s32 3, %s210
        %p212 = scmp.lt.s32.totalorder %s211, 2
        %s213 = scalar_select %p212, %s211, 2
        %s214 = smul.u32 128, %s213
        %s215 = smul.u32 2, %s21
        %s216 = ssub.s32 3, %s215
        %p217 = scmp.lt.s32.totalorder %s216, 2
        %s218 = scalar_select %p217, %s216, 2
        %s219 = smul.u32 128, %s218
        %v220 = vld [vmem:[%s2] sm:$0x7]
        %v221 = vld [vmem:[%s183] sm:$0xff]
        %v222 = vld [vmem:[%s183 + $0x8] sm:$0xff]
        %223 = vadd.xlane.f32.xlu0 %v221
        %v224 = vpop.xlane.xlu0 %223
        %225 = vadd.xlane.f32.xlu0 %v222
        %v226 = vpop.xlane.xlu0 %225
        %v227 = vrcp.pop 128.0
        %v228 = vmul.f32 %v224, %v227
        %v229 = vmul.f32 %v226, %v227
        %v230 = vsub.f32 %v221, %v228
        %v231 = vsub.f32 %v222, %v229
        %v232 = vmul.f32 %v230, %v230
        %v233 = vmul.f32 %v231, %v231
        %234 = vadd.xlane.f32.xlu0 %v232
        %v235 = vpop.xlane.xlu0 %234
        %236 = vadd.xlane.f32.xlu0 %v233
        %v237 = vpop.xlane.xlu0 %236
        %v238 = vmul.f32 %v235, %v227
        %v239 = vmul.f32 %v237, %v227
        %v240 = vadd.f32 %v238, 1e-05
        %v241 = vadd.f32 %v239, 1e-05
        %v242 = vrsqrt.pop %v240
        %v243 = vrsqrt.pop %v241
        %v244 = vmul.f32 %v230, %v242
        %v245 = vmul.f32 %v231, %v243
        %v246 = vld [vmem:[#allocation5] sm:$0xff]
        %v247 = vld [vmem:[#allocation5 + $0x8] sm:$0xff]
        %v248 = vld [vmem:[#allocation5 + $0x10] sm:$0xff]
        %v249 = vld [vmem:[#allocation5 + $0x18] sm:$0xff]
        %v250 = vld [vmem:[#allocation5 + $0x20] sm:$0xff]
        %v251 = vld [vmem:[#allocation5 + $0x28] sm:$0xff]
        %v252 = vld [vmem:[#allocation5 + $0x30] sm:$0xff]
        %v253 = vld [vmem:[#allocation5 + $0x38] sm:$0xff]
        %v254 = vld [vmem:[#allocation5 + $0x40] sm:$0xff]
        %v255 = vld [vmem:[#allocation5 + $0x48] sm:$0xff]
        %v256 = vld [vmem:[#allocation5 + $0x50] sm:$0xff]
        %v257 = vld [vmem:[#allocation5 + $0x58] sm:$0xff]
        %v258 = vld [vmem:[#allocation5 + $0x60] sm:$0xff]
        %v259 = vld [vmem:[#allocation5 + $0x68] sm:$0xff]
        %v260 = vld [vmem:[#allocation5 + $0x70] sm:$0xff]
        %v261 = vld [vmem:[#allocation5 + $0x78] sm:$0xff]
        %v262 = vlaneseq
        %v263 = vshrl.u32 %v262, 7
        %v264 = vsub.s32 0, %v263
        %v265 = vrot.slane %v220, %v264
        %266 = vmatprep.subr.mxu0 0.0
        %267 = vmatpush1.msra.mxu0 %v246
        %268 = vmatprep.subr.mxu0 0.0
        %269 = vmatpush1.msra.mxu0 %v247
        %270 = vmatprep.subr.mxu0 0.0
        %271 = vmatpush1.msra.mxu0 %v248
        %272 = vmatprep.subr.mxu0 0.0
        %273 = vmatpush1.msra.mxu0 %v249
        %274 = vmatprep.subr.mxu0 0.0
        %275 = vmatpush1.msra.mxu0 %v250
        %276 = vmatprep.subr.mxu0 0.0
        %277 = vmatpush1.msra.mxu0 %v251
        %278 = vmatprep.subr.mxu0 0.0
        %279 = vmatpush1.msra.mxu0 %v252
        %280 = vmatprep.subr.mxu0 0.0
        %281 = vmatpush1.msra.mxu0 %v253
        %282 = vmatprep.subr.mxu0 0.0
        %283 = vmatpush1.msra.mxu0 %v254
        %284 = vmatprep.subr.mxu0 0.0
        %285 = vmatpush1.msra.mxu0 %v255
        %286 = vmatprep.subr.mxu0 0.0
        %287 = vmatpush1.msra.mxu0 %v256
        %288 = vmatprep.subr.mxu0 0.0
        %289 = vmatpush1.msra.mxu0 %v257
        %290 = vmatprep.subr.mxu0 0.0
        %291 = vmatpush1.msra.mxu0 %v258
        %292 = vmatprep.subr.mxu0 0.0
        %293 = vmatpush1.msra.mxu0 %v259
        %294 = vmatprep.subr.mxu0 0.0
        %295 = vmatpush1.msra.mxu0 %v260
        %296 = vmatprep.subr.mxu0 0.0
        %297 = vmatpush1.msra.mxu0 %v261
        %298 = vmatprep.subr.mxu0 0.0
        %299 = vmatpush1.msra.mxu0 0.0
        %300 = vmatprep.subr.mxu0 0.0
        %301 = vmatpush1.msra.mxu0 0.0
        %302 = vmatprep.subr.mxu0 0.0
        %303 = vmatpush1.msra.mxu0 0.0
        %304 = vmatprep.subr.mxu0 0.0
        %305 = vmatpush1.msra.mxu0 0.0
        %306 = vmatprep.subr.mxu0 0.0
        %307 = vmatpush1.msra.mxu0 0.0
        %308 = vmatprep.subr.mxu0 0.0
        %309 = vmatpush1.msra.mxu0 0.0
        %310 = vmatprep.subr.mxu0 0.0
        %311 = vmatpush1.msra.mxu0 0.0
        %312 = vmatprep.subr.mxu0 0.0
        %313 = vmatpush1.msra.mxu0 0.0
        %314 = vmatprep.subr.mxu0 0.0
        %315 = vmatpush1.msra.mxu0 0.0
        %316 = vmatprep.subr.mxu0 0.0
        %317 = vmatpush1.msra.mxu0 0.0
        %318 = vmatprep.subr.mxu0 0.0
        %319 = vmatpush1.msra.mxu0 0.0
        %320 = vmatprep.subr.mxu0 0.0
        %321 = vmatpush1.msra.mxu0 0.0
        %322 = vmatprep.subr.mxu0 0.0
        %323 = vmatpush1.msra.mxu0 0.0
        %324 = vmatprep.subr.mxu0 0.0
        %325 = vmatpush1.msra.mxu0 0.0
        %326 = vmatprep.subr.mxu0 0.0
        %327 = vmatpush1.msra.mxu0 0.0
        %328 = vmatprep.subr.mxu0 0.0
        %329 = vmatpush1.msra.mxu0 0.0
        %330 = vmatprep.mubr.f32.mxu0 0.0
        %331 = vmatmul.mubr.f32.gmra.mrb[0].mxu0 %v244
        %v332 = vpop.f32.mrb[0].mxu0
        %v333 = vadd.f32 %v265, %v332
        %v334 = vpop.f32.mrb[0].mxu0
        %335 = vmatprep.mubr.f32.mxu0 0.0
        %336 = vmatmul.mubr.f32.gmra.mrb[0].mxu0 %v245
        %v337 = vpop.f32.mrb[0].mxu0
        %v338 = vadd.f32 %v265, %v337
        %v339 = vpop.f32.mrb[0].mxu0
        %340 = vdwg.mxu0
        %341 = vadd.xlane.f32.xlu0 %v333
        %v342 = vpop.xlane.xlu0 %341
        %343 = vadd.xlane.f32.xlu0 %v338
        %v344 = vpop.xlane.xlu0 %343
        %v345 = vmul.f32 %v342, %v227
        %v346 = vmul.f32 %v344, %v227
        %v347 = vsub.f32 %v333, %v345
        %v348 = vsub.f32 %v338, %v346
        %v349 = vmul.f32 %v347, %v347
        %v350 = vmul.f32 %v348, %v348
        %351 = vadd.xlane.f32.xlu0 %v349
        %v352 = vpop.xlane.xlu0 %351
        %353 = vadd.xlane.f32.xlu0 %v350
        %v354 = vpop.xlane.xlu0 %353
        %v355 = vmul.f32 %v352, %v227
        %v356 = vmul.f32 %v354, %v227
        %v357 = vadd.f32 %v355, 1e-05
        %v358 = vadd.f32 %v356, 1e-05
        %v359 = vrsqrt.pop %v357
        %v360 = vrsqrt.pop %v358
        %v361 = vmul.f32 %v347, %v359
        %v362 = vmul.f32 %v348, %v360
        %v363 = vlaneseq
        %v364 = vshrl.u32 %v363, 7
        %v365 = vsub.s32 1, %v364
        %v366 = vrot.slane %v220, %v365
        %v367 = vmul.f32 %v361, %v366
        %v368 = vmul.f32 %v362, %v366
        %v369 = vlaneseq
        %v370 = vshrl.u32 %v369, 7
        %v371 = vsub.s32 2, %v370
        %v372 = vrot.slane %v220, %v371
        %v373 = vadd.f32 %v367, %v372
        %v374 = vadd.f32 %v368, %v372
        %375 = vst [vmem:[%s209] sm:$0xff] %v373
        %376 = vst [vmem:[%s209 + $0x8] sm:$0xff] %v374
        %s377 = sand.u32 %s97, 1
        %s378 = scalar_lea.sflag [#allocation4], %s377
        %s379 = sand.u32 %s97, 1
        %s380 = smul.addr %s379, 16
        %s381 = scalar_lea.vmem [#allocation7], %s380
        // Predicated region
        $region41: #{tpu_custom_call.1} parent=31 // pred_check
          %p382 = pneg %p107
        $region42: #{tpu_custom_call.1} parent=31 // pred_check_branch
          %384 = sbr.rel (%p382) target = $region44
        $region43: #{tpu_custom_call.1} parent=31 // pred_region
          %s385 = smul.u32 2, %s21
          %s386 = ssub.s32 3, %s385
          %p387 = scmp.lt.s32.totalorder %s386, 2
          %s388 = scalar_select %p387, %s386, 2
          %s389 = smul.u32 128, %s388
          %s391 = ssub.s32 256, %s389
          %392 = vsyncadd %s378, %s391
          %p393 = scmp.ne.s32.totalorder 0, %s389
          %s394 = smul.addr %s385, 128
          %s395 = scalar_lea.hbm %s3, %s394
          %s396 = smul.u32 8, %s388
          %s397 = sshll.u32 %s381, 4
          %s398 = int_to_ptr.vmem [resolvable:$true] %s397
          %s399 = sshll.u32 %s396, 4
          %403 = dma.vmem_to_hbm [thread:$0]  (%p393), %s398, %s399, %s395, %s378, 128, 128, 8
        $region44: #{tpu_custom_call.1} parent=31 // pred_fallthru
          _
      $region32: #{tpu_custom_call.1} parent=5 // pred_fallthru
        _
      %p404 = scmp.le.s32.totalorder 2, %s16
      // Predicated region
      $region45: #{tpu_custom_call.1} parent=5 // pred_check
        %p405 = pneg %p404
      $region46: #{tpu_custom_call.1} parent=5 // pred_check_branch
        %407 = sbr.rel (%p405) target = $region48
      $region47: #{tpu_custom_call.1} parent=5 // pred_region
        %s408 = ssub.s32 %s16, 2
        // Predicated region
        $region49: #{tpu_custom_call.1} parent=47 // pred_check
          %p409 = pneg %p113
        $region50: #{tpu_custom_call.1} parent=47 // pred_check_branch
          %411 = sbr.rel (%p409) target = $region52
        $region51: #{tpu_custom_call.1} parent=47 // pred_region
          %s412 = sand.u32 %s98, 1
          %s413 = scalar_lea.sflag [#allocation4], %s412
          %s414 = sand.u32 %s98, 1
          %s415 = smul.addr %s414, 16
          %s416 = scalar_lea.vmem [#allocation7], %s415
          %417 = dma.done %s413, 256
        $region52: #{tpu_custom_call.1} parent=47 // pred_fallthru
          _
      $region48: #{tpu_custom_call.1} parent=5 // pred_fallthru
        _
    $region6: #{tpu_custom_call.1} parent=1 // loop_footer
      %s20 = sadd.s32 1, %s16
    $region7: #{tpu_custom_call.1} parent=1 // loop_footer_branch
      %15 = sbr.rel target = $region3
    $region8: #{tpu_custom_call.1} parent=1 // loop_exit
      _
    %418 = vsyncpa [#allocation3], 1
    %s419 = scalar_lea.sflag [#allocation3], 1
    %420 = vsyncpa %s419, 1
    %421 = vsyncpa [#allocation6], 1
    %422 = vsyncpa [#allocation4], 1
    %s423 = scalar_lea.sflag [#allocation4], 1
    %424 = vsyncpa %s423, 1

// kernel: tpu_custom_call.1
$region0: #{tpu_custom_call.1}
  #allocation0 [shape = 'u32[]', space=smem, size = 0x4, offset = 0x4, fixed_abs, tag = 'smem constant byte address 0x4 - core index']
  #allocation1 [shape = 'u32[144,128]{1,0:T(1,128)}', space=vmem, size = 0x12000, scoped, tag = 'internal scratch']
  %s0 = inlined_call_operand.hbm [shape: f32[18,128], index: 0, kind: input, shape index: {}]
  %s1 = inlined_call_operand.hbm [shape: f32[128,128], index: 1, kind: input, shape index: {}]
  %s2 = inlined_call_operand.vmem [shape: f32[3,128], index: 2, kind: input, shape index: {}]
  %s3 = inlined_call_operand.hbm [shape: f32[18,128], index: 3, kind: output, shape index: {}]
  %s4 = sld [smem:[#allocation0]]
  $region53: #{tpu_custom_call.1} parent=0
    _
  %s6 = ssub.s32 1, %s4
  %s7 = scalar_select 0, %s6, %s4
  $region1: #{tpu_custom_call.1} parent=0
    #allocation2 [shape = 'u8[16384]{0}', space=vmem, size = 0x4000, scoped, tag = 'input window, operand 0']
    #allocation3 [shape = 's32[2]{0}', space=sflag, size = 0x8, scoped, tag = 'scoped memory for tpu_custom_call.1']
    #allocation4 [shape = 's32[2]{0}', space=sflag, size = 0x8, scoped, tag = 'scoped memory for tpu_custom_call.1']
    #allocation5 [shape = 'u8[65536]{0}', space=vmem, size = 0x10000, scoped, tag = 'input window, operand 1, single buffered']
    #allocation6 [shape = 's32[1]{0}', space=sflag, size = 0x4, scoped, tag = 'scoped memory for tpu_custom_call.1']
    #allocation7 [shape = 'u8[16384]{0}', space=vmem, size = 0x4000, scoped, tag = 'output window, operand 0']
    %8 = vsyncpa [#allocation3], 0
    %s9 = scalar_lea.sflag [#allocation3], 1
    %10 = vsyncpa %s9, 0
    %11 = vsyncpa [#allocation6], 0
    %12 = vsyncpa [#allocation4], 0
    %s13 = scalar_lea.sflag [#allocation4], 1
    %14 = vsyncpa %s13, 0
    loop: start=0, step=1, limit=4
    $region2: #{tpu_custom_call.1} parent=1 // loop_pre_header
      _
    $region3: #{tpu_custom_call.1} parent=1 // loop_header
      %s16 = sphi 0, %s20
      %p17 = scmp.ge.s32.totalorder %s16, 4
      %s26 = sphi 0, %s28
      %s29 = sphi 0, %s26
      %s30 = sphi 0, %s29
      %s46 = sphi 0, %s30
      %s50 = sphi 0, %s50
      %s52 = sphi 0, %s50
      %s53 = sphi 0, %s52
      %s67 = sphi 0, %s53
      %s71 = sphi 0, %s71
      %s73 = sphi 0, %s71
      %s74 = sphi 0, %s73
      %s88 = sphi 0, %s74
      %s94 = sphi 0, %s96
      %s97 = sphi 0, %s94
      %s98 = sphi 0, %s97
      %s114 = sphi 0, %s98
    $region4: #{tpu_custom_call.1} parent=1 // loop_header_branch
      %19 = sbr.rel (%p17) target = $region8
    $region5: #{tpu_custom_call.1} parent=1 // loop_body
      %s21 = ssub.s32 %s16, 1
      %s22 = ssub.s32 %s16, 2
      %s23 = sadd.s32 %s16, 1
      %s24 = ssub.s32 %s16, %s23
      %p25 = scmp.eq.s32.totalorder %s24, 0
      %s27 = sadd.s32 %s26, 1
      %s28 = scalar_select %p25, %s26, %s27
      %p31 = pneg %p25
      %p32 = scmp.eq.s32.totalorder %s16, 1
      %p33 = por %p31, %p32
      %p34 = scmp.ne.s32.totalorder %s26, %s29
      %p35 = scmp.eq.s32.totalorder %s16, 0
      %p36 = por %p34, %p35
      %p37 = scmp.ne.s32.totalorder %s26, %s29
      %p38 = scmp.eq.s32.totalorder %s21, 1
      %p39 = por %p37, %p38
      %p40 = scmp.ne.s32.totalorder %s29, %s30
      %p41 = scmp.eq.s32.totalorder %s21, 0
      %p42 = por %p40, %p41
      %p43 = scmp.ne.s32.totalorder %s29, %s30
      %p44 = scmp.eq.s32.totalorder %s22, 1
      %p45 = por %p43, %p44
      %p47 = scmp.ne.s32.totalorder %s30, %s46
      %p48 = scmp.eq.s32.totalorder %s22, 0
      %p49 = por %p47, %p48
      %s51 = sadd.s32 %s50, 1
      %p54 = scmp.eq.s32.totalorder %s16, 1
      %p55 = scmp.ne.s32.totalorder %s50, %s52
      %p56 = scmp.eq.s32.totalorder %s16, 0
      %p57 = por %p55, %p56
      %p58 = scmp.ne.s32.totalorder %s50, %s52
      %p59 = scmp.eq.s32.totalorder %s21, 1
      %p60 = por %p58, %p59
      %p61 = scmp.ne.s32.totalorder %s52, %s53
      %p62 = scmp.eq.s32.totalorder %s21, 0
      %p63 = por %p61, %p62
      %p64 = scmp.ne.s32.totalorder %s52, %s53
      %p65 = scmp.eq.s32.totalorder %s22, 1
      %p66 = por %p64, %p65
      %p68 = scmp.ne.s32.totalorder %s53, %s67
      %p69 = scmp.eq.s32.totalorder %s22, 0
      %p70 = por %p68, %p69
      %s72 = sadd.s32 %s71, 1
      %p75 = scmp.eq.s32.totalorder %s16, 1
      %p76 = scmp.ne.s32.totalorder %s71, %s73
      %p77 = scmp.eq.s32.totalorder %s16, 0
      %p78 = por %p76, %p77
      %p79 = scmp.ne.s32.totalorder %s71, %s73
      %p80 = scmp.eq.s32.totalorder %s21, 1
      %p81 = por %p79, %p80
      %p82 = scmp.ne.s32.totalorder %s73, %s74
      %p83 = scmp.eq.s32.totalorder %s21, 0
      %p84 = por %p82, %p83
      %p85 = scmp.ne.s32.totalorder %s73, %s74
      %p86 = scmp.eq.s32.totalorder %s22, 1
      %p87 = por %p85, %p86
      %p89 = scmp.ne.s32.totalorder %s74, %s88
      %p90 = scmp.eq.s32.totalorder %s22, 0
      %p91 = por %p89, %p90
      %s92 = ssub.s32 %s16, %s23
      %p93 = scmp.eq.s32.totalorder %s92, 0
      %s95 = sadd.s32 %s94, 1
      %s96 = scalar_select %p93, %s94, %s95
      %p99 = pneg %p93
      %p100 = scmp.eq.s32.totalorder %s16, 1
      %p101 = por %p99, %p100
      %p102 = scmp.ne.s32.totalorder %s94, %s97
      %p103 = scmp.eq.s32.totalorder %s16, 0
      %p104 = por %p102, %p103
      %p105 = scmp.ne.s32.totalorder %s94, %s97
      %p106 = scmp.eq.s32.totalorder %s21, 1
      %p107 = por %p105, %p106
      %p108 = scmp.ne.s32.totalorder %s97, %s98
      %p109 = scmp.eq.s32.totalorder %s21, 0
      %p110 = por %p108, %p109
      %p111 = scmp.ne.s32.totalorder %s97, %s98
      %p112 = scmp.eq.s32.totalorder %s22, 1
      %p113 = por %p111, %p112
      %p115 = scmp.ne.s32.totalorder %s98, %s114
      %p116 = scmp.eq.s32.totalorder %s22, 0
      %p117 = por %p115, %p116
      %p118 = scmp.le.s32.totalorder 1, %s16
      %p119 = scmp.lt.s32.totalorder %s16, 3
      %p120 = pnand %p118, %p119
      %p121 = pneg %p120
      // Predicated region
      $region9: #{tpu_custom_call.1} parent=5 // pred_check
        _
      $region10: #{tpu_custom_call.1} parent=5 // pred_check_branch
        %123 = sbr.rel (%p120) target = $region12
      $region11: #{tpu_custom_call.1} parent=5 // pred_region
        %s124 = ssub.s32 %s16, 1
        // Predicated region
        $region13: #{tpu_custom_call.1} parent=11 // pred_check
          %p125 = pneg %p63
        $region14: #{tpu_custom_call.1} parent=11 // pred_check_branch
          %127 = sbr.rel (%p125) target = $region16
        $region15: #{tpu_custom_call.1} parent=11 // pred_region
          %s129 = ssub.s32 2048, 2048
          %130 = vsyncadd [#allocation6], %s129
          %s131 = sshll.u32 [#allocation5], 4
          %s132 = int_to_ptr.vmem [resolvable:$true] %s131
          %137 = dma.hbm_to_vmem [thread:$0]  %s1, 2048, %s132, [#allocation6], 128, 128, 8
        $region16: #{tpu_custom_call.1} parent=11 // pred_fallthru
          _
        // Predicated region
        $region17: #{tpu_custom_call.1} parent=11 // pred_check
          %p138 = pneg %p84
        $region18: #{tpu_custom_call.1} parent=11 // pred_check_branch
          %140 = sbr.rel (%p138) target = $region20
        $region19: #{tpu_custom_call.1} parent=11 // pred_region
          _
        $region20: #{tpu_custom_call.1} parent=11 // pred_fallthru
          _
      $region12: #{tpu_custom_call.1} parent=5 // pred_fallthru
        _
      %p141 = scmp.lt.s32.totalorder %s16, 2
      // Predicated region
      $region21: #{tpu_custom_call.1} parent=5 // pred_check
        %p142 = pneg %p141
      $region22: #{tpu_custom_call.1} parent=5 // pred_check_branch
        %144 = sbr.rel (%p142) target = $region24
      $region23: #{tpu_custom_call.1} parent=5 // pred_region
        // Predicated region
        $region25: #{tpu_custom_call.1} parent=23 // pred_check
          %p145 = pneg %p36
        $region26: #{tpu_custom_call.1} parent=23 // pred_check_branch
          %147 = sbr.rel (%p145) target = $region28
        $region27: #{tpu_custom_call.1} parent=23 // pred_region
          %s148 = sand.u32 %s26, 1
          %s149 = scalar_lea.sflag [#allocation3], %s148
          %s150 = sand.u32 %s26, 1
          %s151 = smul.addr %s150, 16
          %s152 = scalar_lea.vmem [#allocation2], %s151
          %s153 = smul.u32 2, %s16
          %s154 = ssub.s32 3, %s153
          %p155 = scmp.lt.s32.totalorder %s154, 2
          %s156 = scalar_select %p155, %s154, 2
          %s157 = smul.u32 128, %s156
          %s159 = ssub.s32 256, %s157
          %160 = vsyncadd %s149, %s159
          %p161 = scmp.ne.s32.totalorder 0, %s157
          %s162 = smul.addr %s153, 128
          %s163 = scalar_lea.hbm %s0, %s162
          %s164 = smul.u32 8, %s156
          %s165 = sshll.u32 %s152, 4
          %s166 = int_to_ptr.vmem [resolvable:$true] %s165
          %s167 = sshll.u32 %s164, 4
          %171 = dma.hbm_to_vmem [thread:$0]  (%p161), %s163, %s167, %s166, %s149, 128, 128, 8
        $region28: #{tpu_custom_call.1} parent=23 // pred_fallthru
          _
      $region24: #{tpu_custom_call.1} parent=5 // pred_fallthru
        _
      %p172 = scmp.le.s32.totalorder 1, %s16
      %p173 = scmp.lt.s32.totalorder %s16, 3
      %p174 = pnand %p172, %p173
      %p175 = pneg %p174
      // Predicated region
      $region29: #{tpu_custom_call.1} parent=5 // pred_check
        _
      $region30: #{tpu_custom_call.1} parent=5 // pred_check_branch
        %177 = sbr.rel (%p174) target = $region32
      $region31: #{tpu_custom_call.1} parent=5 // pred_region
        %s178 = ssub.s32 %s16, 1
        %s179 = sand.u32 %s29, 1
        %s180 = scalar_lea.sflag [#allocation3], %s179
        %s181 = sand.u32 %s29, 1
        %s182 = smul.addr %s181, 16
        %s183 = scalar_lea.vmem [#allocation2], %s182
        // Predicated region
        $region33: #{tpu_custom_call.1} parent=31 // pred_check
          %p184 = pneg %p42
        $region34: #{tpu_custom_call.1} parent=31 // pred_check_branch
          %186 = sbr.rel (%p184) target = $region36
        $region35: #{tpu_custom_call.1} parent=31 // pred_region
          %187 = dma.done %s180, 256
        $region36: #{tpu_custom_call.1} parent=31 // pred_fallthru
          _
        // Predicated region
        $region37: #{tpu_custom_call.1} parent=31 // pred_check
          %p188 = pneg %p63
        $region38: #{tpu_custom_call.1} parent=31 // pred_check_branch
          %190 = sbr.rel (%p188) target = $region40
        $region39: #{tpu_custom_call.1} parent=31 // pred_region
          %191 = dma.done [#allocation6], 2048
        $region40: #{tpu_custom_call.1} parent=31 // pred_fallthru
          _
        %s192 = sand.u32 %s29, 1
        %s193 = scalar_lea.sflag [#allocation3], %s192
        %s194 = sand.u32 %s29, 1
        %s195 = smul.addr %s194, 16
        %s196 = scalar_lea.vmem [#allocation2], %s195
        %p197 = pneg %p42
        %p198 = pneg %p39
        %p199 = pneg %p63
        %p200 = pneg %p60
        %p201 = pneg %p84
        %p202 = pneg %p81
        %p203 = pneg %p110
        %p204 = pneg %p107
        %s205 = sand.u32 %s97, 1
        %s206 = scalar_lea.sflag [#allocation4], %s205
        %s207 = sand.u32 %s97, 1
        %s208 = smul.addr %s207, 16
        %s209 = scalar_lea.vmem [#allocation7], %s208
        %s210 = smul.u32 2, %s21
        %s211 = ssub.s32 3, %s210
        %p212 = scmp.lt.s32.totalorder %s211, 2
        %s213 = scalar_select %p212, %s211, 2
        %s214 = smul.u32 128, %s213
        %s215 = smul.u32 2, %s21
        %s216 = ssub.s32 3, %s215
        %p217 = scmp.lt.s32.totalorder %s216, 2
        %s218 = scalar_select %p217, %s216, 2
        %s219 = smul.u32 128, %s218
        %v220 = vld [vmem:[%s2] sm:$0x7]
        %v221 = vld [vmem:[%s183] sm:$0xff]
        %v222 = vld [vmem:[%s183 + $0x8] sm:$0xff]
        %223 = vadd.xlane.f32.xlu0 %v221
        %v224 = vpop.xlane.xlu0 %223
        %225 = vadd.xlane.f32.xlu0 %v222
        %v226 = vpop.xlane.xlu0 %225
        %v227 = vrcp.pop 128.0
        %v228 = vmul.f32 %v224, %v227
        %v229 = vmul.f32 %v226, %v227
        %v230 = vsub.f32 %v221, %v228
        %v231 = vsub.f32 %v222, %v229
        %v232 = vmul.f32 %v230, %v230
        %v233 = vmul.f32 %v231, %v231
        %234 = vadd.xlane.f32.xlu0 %v232
        %v235 = vpop.xlane.xlu0 %234
        %236 = vadd.xlane.f32.xlu0 %v233
        %v237 = vpop.xlane.xlu0 %236
        %v238 = vmul.f32 %v235, %v227
        %v239 = vmul.f32 %v237, %v227
        %v240 = vadd.f32 %v238, 1e-05
        %v241 = vadd.f32 %v239, 1e-05
        %v242 = vrsqrt.pop %v240
        %v243 = vrsqrt.pop %v241
        %v244 = vmul.f32 %v230, %v242
        %v245 = vmul.f32 %v231, %v243
        %v246 = vld [vmem:[#allocation5] sm:$0xff]
        %v247 = vld [vmem:[#allocation5 + $0x8] sm:$0xff]
        %v248 = vld [vmem:[#allocation5 + $0x10] sm:$0xff]
        %v249 = vld [vmem:[#allocation5 + $0x18] sm:$0xff]
        %v250 = vld [vmem:[#allocation5 + $0x20] sm:$0xff]
        %v251 = vld [vmem:[#allocation5 + $0x28] sm:$0xff]
        %v252 = vld [vmem:[#allocation5 + $0x30] sm:$0xff]
        %v253 = vld [vmem:[#allocation5 + $0x38] sm:$0xff]
        %v254 = vld [vmem:[#allocation5 + $0x40] sm:$0xff]
        %v255 = vld [vmem:[#allocation5 + $0x48] sm:$0xff]
        %v256 = vld [vmem:[#allocation5 + $0x50] sm:$0xff]
        %v257 = vld [vmem:[#allocation5 + $0x58] sm:$0xff]
        %v258 = vld [vmem:[#allocation5 + $0x60] sm:$0xff]
        %v259 = vld [vmem:[#allocation5 + $0x68] sm:$0xff]
        %v260 = vld [vmem:[#allocation5 + $0x70] sm:$0xff]
        %v261 = vld [vmem:[#allocation5 + $0x78] sm:$0xff]
        %v262 = vlaneseq
        %v263 = vshrl.u32 %v262, 7
        %v264 = vsub.s32 0, %v263
        %v265 = vrot.slane %v220, %v264
        %266 = vmatprep.subr.mxu0 0.0
        %267 = vmatpush1.msra.mxu0 %v246
        %268 = vmatprep.subr.mxu0 0.0
        %269 = vmatpush1.msra.mxu0 %v247
        %270 = vmatprep.subr.mxu0 0.0
        %271 = vmatpush1.msra.mxu0 %v248
        %272 = vmatprep.subr.mxu0 0.0
        %273 = vmatpush1.msra.mxu0 %v249
        %274 = vmatprep.subr.mxu0 0.0
        %275 = vmatpush1.msra.mxu0 %v250
        %276 = vmatprep.subr.mxu0 0.0
        %277 = vmatpush1.msra.mxu0 %v251
        %278 = vmatprep.subr.mxu0 0.0
        %279 = vmatpush1.msra.mxu0 %v252
        %280 = vmatprep.subr.mxu0 0.0
        %281 = vmatpush1.msra.mxu0 %v253
        %282 = vmatprep.subr.mxu0 0.0
        %283 = vmatpush1.msra.mxu0 %v254
        %284 = vmatprep.subr.mxu0 0.0
        %285 = vmatpush1.msra.mxu0 %v255
        %286 = vmatprep.subr.mxu0 0.0
        %287 = vmatpush1.msra.mxu0 %v256
        %288 = vmatprep.subr.mxu0 0.0
        %289 = vmatpush1.msra.mxu0 %v257
        %290 = vmatprep.subr.mxu0 0.0
        %291 = vmatpush1.msra.mxu0 %v258
        %292 = vmatprep.subr.mxu0 0.0
        %293 = vmatpush1.msra.mxu0 %v259
        %294 = vmatprep.subr.mxu0 0.0
        %295 = vmatpush1.msra.mxu0 %v260
        %296 = vmatprep.subr.mxu0 0.0
        %297 = vmatpush1.msra.mxu0 %v261
        %298 = vmatprep.subr.mxu0 0.0
        %299 = vmatpush1.msra.mxu0 0.0
        %300 = vmatprep.subr.mxu0 0.0
        %301 = vmatpush1.msra.mxu0 0.0
        %302 = vmatprep.subr.mxu0 0.0
        %303 = vmatpush1.msra.mxu0 0.0
        %304 = vmatprep.subr.mxu0 0.0
        %305 = vmatpush1.msra.mxu0 0.0
        %306 = vmatprep.subr.mxu0 0.0
        %307 = vmatpush1.msra.mxu0 0.0
        %308 = vmatprep.subr.mxu0 0.0
        %309 = vmatpush1.msra.mxu0 0.0
        %310 = vmatprep.subr.mxu0 0.0
        %311 = vmatpush1.msra.mxu0 0.0
        %312 = vmatprep.subr.mxu0 0.0
        %313 = vmatpush1.msra.mxu0 0.0
        %314 = vmatprep.subr.mxu0 0.0
        %315 = vmatpush1.msra.mxu0 0.0
        %316 = vmatprep.subr.mxu0 0.0
        %317 = vmatpush1.msra.mxu0 0.0
        %318 = vmatprep.subr.mxu0 0.0
        %319 = vmatpush1.msra.mxu0 0.0
        %320 = vmatprep.subr.mxu0 0.0
        %321 = vmatpush1.msra.mxu0 0.0
        %322 = vmatprep.subr.mxu0 0.0
        %323 = vmatpush1.msra.mxu0 0.0
        %324 = vmatprep.subr.mxu0 0.0
        %325 = vmatpush1.msra.mxu0 0.0
        %326 = vmatprep.subr.mxu0 0.0
        %327 = vmatpush1.msra.mxu0 0.0
        %328 = vmatprep.subr.mxu0 0.0
        %329 = vmatpush1.msra.mxu0 0.0
        %330 = vmatprep.mubr.f32.mxu0 0.0
        %331 = vmatmul.mubr.f32.gmra.mrb[0].mxu0 %v244
        %v332 = vpop.f32.mrb[0].mxu0
        %v333 = vadd.f32 %v265, %v332
        %v334 = vpop.f32.mrb[0].mxu0
        %335 = vmatprep.mubr.f32.mxu0 0.0
        %336 = vmatmul.mubr.f32.gmra.mrb[0].mxu0 %v245
        %v337 = vpop.f32.mrb[0].mxu0
        %v338 = vadd.f32 %v265, %v337
        %v339 = vpop.f32.mrb[0].mxu0
        %340 = vdwg.mxu0
        %341 = vadd.xlane.f32.xlu0 %v333
        %v342 = vpop.xlane.xlu0 %341
        %343 = vadd.xlane.f32.xlu0 %v338
        %v344 = vpop.xlane.xlu0 %343
        %v345 = vmul.f32 %v342, %v227
        %v346 = vmul.f32 %v344, %v227
        %v347 = vsub.f32 %v333, %v345
        %v348 = vsub.f32 %v338, %v346
        %v349 = vmul.f32 %v347, %v347
        %v350 = vmul.f32 %v348, %v348
        %351 = vadd.xlane.f32.xlu0 %v349
        %v352 = vpop.xlane.xlu0 %351
        %353 = vadd.xlane.f32.xlu0 %v350
        %v354 = vpop.xlane.xlu0 %353
        %v355 = vmul.f32 %v352, %v227
        %v356 = vmul.f32 %v354, %v227
        %v357 = vadd.f32 %v355, 1e-05
        %v358 = vadd.f32 %v356, 1e-05
        %v359 = vrsqrt.pop %v357
        %v360 = vrsqrt.pop %v358
        %v361 = vmul.f32 %v347, %v359
        %v362 = vmul.f32 %v348, %v360
        %v363 = vlaneseq
        %v364 = vshrl.u32 %v363, 7
        %v365 = vsub.s32 1, %v364
        %v366 = vrot.slane %v220, %v365
        %v367 = vmul.f32 %v361, %v366
        %v368 = vmul.f32 %v362, %v366
        %v369 = vlaneseq
        %v370 = vshrl.u32 %v369, 7
        %v371 = vsub.s32 2, %v370
        %v372 = vrot.slane %v220, %v371
        %v373 = vadd.f32 %v367, %v372
        %v374 = vadd.f32 %v368, %v372
        %375 = vst [vmem:[%s209] sm:$0xff] %v373
        %376 = vst [vmem:[%s209 + $0x8] sm:$0xff] %v374
        %s377 = sand.u32 %s97, 1
        %s378 = scalar_lea.sflag [#allocation4], %s377
        %s379 = sand.u32 %s97, 1
        %s380 = smul.addr %s379, 16
        %s381 = scalar_lea.vmem [#allocation7], %s380
        // Predicated region
        $region41: #{tpu_custom_call.1} parent=31 // pred_check
          %p382 = pneg %p107
        $region42: #{tpu_custom_call.1} parent=31 // pred_check_branch
          %384 = sbr.rel (%p382) target = $region44
        $region43: #{tpu_custom_call.1} parent=31 // pred_region
          %s385 = smul.u32 2, %s21
          %s386 = ssub.s32 3, %s385
          %p387 = scmp.lt.s32.totalorder %s386, 2
          %s388 = scalar_select %p387, %s386, 2
          %s389 = smul.u32 128, %s388
          %s391 = ssub.s32 256, %s389
          %392 = vsyncadd %s378, %s391
          %p393 = scmp.ne.s32.totalorder 0, %s389
          %s394 = smul.addr %s385, 128
          %s395 = scalar_lea.hbm %s3, %s394
          %s396 = smul.u32 8, %s388
          %s397 = sshll.u32 %s381, 4
          %s398 = int_to_ptr.vmem [resolvable:$true] %s397
          %s399 = sshll.u32 %s396, 4
          %403 = dma.vmem_to_hbm [thread:$0]  (%p393), %s398, %s399, %s395, %s378, 128, 128, 8
        $region44: #{tpu_custom_call.1} parent=31 // pred_fallthru
          _
      $region32: #{tpu_custom_call.1} parent=5 // pred_fallthru
        _
      %p404 = scmp.le.s32.totalorder 2, %s16
      // Predicated region
      $region45: #{tpu_custom_call.1} parent=5 // pred_check
        %p405 = pneg %p404
      $region46: #{tpu_custom_call.1} parent=5 // pred_check_branch
        %407 = sbr.rel (%p405) target = $region48
      $region47: #{tpu_custom_call.1} parent=5 // pred_region
        %s408 = ssub.s32 %s16, 2
        // Predicated region
        $region49: #{tpu_custom_call.1} parent=47 // pred_check
          %p409 = pneg %p113
        $region50: #{tpu_custom_call.1} parent=47 // pred_check_branch
          %411 = sbr.rel (%p409) target = $region52
        $region51: #{tpu_custom_call.1} parent=47 // pred_region
          %s412 = sand.u32 %s98, 1
          %s413 = scalar_lea.sflag [#allocation4], %s412
          %s414 = sand.u32 %s98, 1
          %s415 = smul.addr %s414, 16
          %s416 = scalar_lea.vmem [#allocation7], %s415
          %417 = dma.done %s413, 256
        $region52: #{tpu_custom_call.1} parent=47 // pred_fallthru
          _
      $region48: #{tpu_custom_call.1} parent=5 // pred_fallthru
        _
    $region6: #{tpu_custom_call.1} parent=1 // loop_footer
      %s20 = sadd.s32 1, %s16
    $region7: #{tpu_custom_call.1} parent=1 // loop_footer_branch
      %15 = sbr.rel target = $region3
    $region8: #{tpu_custom_call.1} parent=1 // loop_exit
      _
    %418 = vsyncpa [#allocation3], 1
    %s419 = scalar_lea.sflag [#allocation3], 1
    %420 = vsyncpa %s419, 1
    %421 = vsyncpa [#allocation6], 1
    %422 = vsyncpa [#allocation4], 1
    %s423 = scalar_lea.sflag [#allocation4], 1
    %424 = vsyncpa %s423, 1

</llo_original>
